<compile_context>
chip_gen: v7x
topology: tpu7x:2x2x1
jax: 0.10.0
libtpu: 0.0.40
codegen_flags: <defaults>
</compile_context>

<pallas_src>
import jax
import jax.numpy as jnp
from jax import lax
from jax.experimental import pallas as pl
from jax.experimental.pallas import tpu as pltpu


# --------------------------------------------------------------------------
# Kernels
# --------------------------------------------------------------------------
def _fczero_resident_kernel(h_ref, w_ref, b_ref, alpha_ref, out_ref):
    """Small-problem fast path: full weight stack resident in VMEM.

    h_ref:     (BM, D)        VMEM   input rows for this batch tile
    w_ref:     (deep, D, D)   VMEM   full weight stack (resident)
    b_ref:     (deep, 1, D)   VMEM   full bias stack (resident)
    alpha_ref: (deep,)        SMEM   per-layer ReZero scalars
    out_ref:   (BM, D)        VMEM   output rows
    """
    deep = w_ref.shape[0]
    h0 = h_ref[...].astype(jnp.float32)

    def body(l, acc):
        z = jnp.dot(acc.astype(w_ref.dtype), w_ref[l],
                    preferred_element_type=jnp.float32)
        z = z + b_ref[l].astype(jnp.float32)          # (1, D) broadcasts over rows
        return acc + alpha_ref[l] * jnp.maximum(z, 0.0)

    h = lax.fori_loop(0, deep, body, h0, unroll=True)
    out_ref[...] = h.astype(out_ref.dtype)


def _fczero_streamed_kernel(h_ref, w_ref, b_ref, alpha_ref, out_ref, acc_ref):
    """Large-problem path: one (batch_tile, layer) grid step, weights streamed.

    h_ref:     (BM, D)        VMEM   input rows (resident across the layer axis)
    w_ref:     (1, D, D)      VMEM   this layer's weight (streamed per layer)
    b_ref:     (deep, 1, D)   VMEM   full bias stack (resident, constant index_map)
    alpha_ref: (deep,)        SMEM   per-layer ReZero scalars
    out_ref:   (BM, D)        VMEM   output rows (written once, at the last layer)
    acc_ref:   (BM, D) f32    VMEM   residual-stream accumulator scratch
    """
    layer = pl.program_id(1)
    n_layers = pl.num_programs(1)

    @pl.when(layer == 0)
    def _init():
        acc_ref[...] = h_ref[...].astype(jnp.float32)

    h = acc_ref[...]                                   # f32 residual stream
    z = jnp.dot(h.astype(w_ref.dtype), w_ref[0],
                preferred_element_type=jnp.float32)    # bf16 MXU, f32 accumulate
    z = z + b_ref[layer].astype(jnp.float32)
    a = jnp.maximum(z, 0.0)                            # ReLU
    acc_ref[...] = h + alpha_ref[layer] * a            # ReZero residual update

    @pl.when(layer == n_layers - 1)
    def _store():
        out_ref[...] = acc_ref[...].astype(out_ref.dtype)


# --------------------------------------------------------------------------
# Host-side helpers
# --------------------------------------------------------------------------
def _vmem_capacity_bytes():
    try:
        info = pltpu.get_tpu_info()
        cap = getattr(info, "vmem_capacity_bytes", None)
        if cap:
            return int(cap)
    except Exception:
        pass
    return 64 * 1024 * 1024        # conservative: v7x per-TC VMEM


def _vmem_limit(required_bytes, vmem_cap):
    headroom = 2 * 1024 * 1024
    limit = max(16 * 1024 * 1024, 2 * int(required_bytes))
    limit = min(limit, vmem_cap - headroom)
    return int(max(limit, required_bytes + headroom))


def _choose_block_m(batch, d, wbytes, hbytes, deep, vmem_cap):
    """Largest multiple-of-8 divisor of batch that fits VMEM (prefer big tiles:
    weight HBM traffic scales with the number of batch tiles).  Split into >=2
    even tiles only when batch >= 1024 so v7x megacore has work per core."""
    if batch % 8 != 0:
        return batch                                   # full-array block
    cands = [m for m in range(8, batch + 1, 8) if batch % m == 0]

    budget = int(0.6 * vmem_cap)
    fixed = 2 * d * d * wbytes + 2 * deep * d * 4      # dbl-buf weight + resident bias

    def tile_bytes(m):
        # h in + out (double buffered) + f32 accumulator scratch
        return fixed + 4 * m * d * hbytes + m * d * 4

    fitting = [m for m in cands if tile_bytes(m) <= budget] or [cands[0]]

    max_block = min(batch, 1024)
    if batch >= 1024:
        max_block = min(max_block, batch // 2)         # >= 2 even tiles (megacore)
    return max((m for m in fitting if m <= max_block), default=fitting[0])


def fczero_forward(h, weights, biases, alphas, *, block_m=None,
                   weight_resident=None):
    """h: (B, D); weights: (deep, D, D) (pre-transposed, e.g. bf16);
    biases: (deep, D); alphas: (deep,).  Returns (B, D) in h.dtype."""
    deep, d_in, d_out = weights.shape
    batch, d = h.shape
    assert d_in == d_out == d, "square per-layer Linear expected"

    wbytes = weights.dtype.itemsize
    hbytes = h.dtype.itemsize
    vmem_cap = _vmem_capacity_bytes()

    if block_m is None:
        block_m = _choose_block_m(batch, d, wbytes, hbytes, deep, vmem_cap)
    assert batch % block_m == 0
    batch_tiles = batch // block_m

    b3 = biases.reshape(deep, 1, d).astype(jnp.float32)   # lane-dense, resident
    alphas = alphas.astype(jnp.float32)

    weight_stack_bytes = deep * d * d * wbytes
    if weight_resident is None:
        weight_resident = weight_stack_bytes <= 4 * 1024 * 1024

    flops = 2 * deep * batch * d * d
    bytes_accessed = (batch_tiles * (weight_stack_bytes + deep * d * 4)
                      + 2 * batch * d * hbytes)            # weights re-streamed / tile
    cost = pl.CostEstimate(flops=flops, transcendentals=0,
                           bytes_accessed=bytes_accessed)

    if weight_resident:
        vmem_need = (2 * weight_stack_bytes + 2 * deep * d * 4
                     + 4 * block_m * d * hbytes)
        return pl.pallas_call(
            _fczero_resident_kernel,
            out_shape=jax.ShapeDtypeStruct(h.shape, h.dtype),
            grid=(batch_tiles,),
            in_specs=[
                pl.BlockSpec((block_m, d), lambda i: (i, 0)),        # h tile
                pl.BlockSpec((deep, d, d), lambda i: (0, 0, 0)),     # resident weights
                pl.BlockSpec((deep, 1, d), lambda i: (0, 0, 0)),     # resident biases
                pl.BlockSpec(memory_space=pltpu.MemorySpace.SMEM),   # alphas
            ],
            out_specs=pl.BlockSpec((block_m, d), lambda i: (i, 0)),
            cost_estimate=cost,
            compiler_params=pltpu.CompilerParams(
                dimension_semantics=("parallel",),
                vmem_limit_bytes=_vmem_limit(vmem_need, vmem_cap)),
        )(h, weights, b3, alphas)

    # TODO(synk): when the double-buffered (D, D) weight block approaches v7x's
    # 64 MiB/TC VMEM (D >~ 2900 in bf16), add an output-feature (N) tile axis
    # to the weight BlockSpec instead of streaming full (D, D) blocks.
    vmem_need = (2 * d * d * wbytes + 2 * deep * d * 4
                 + 4 * block_m * d * hbytes + block_m * d * 4)
    return pl.pallas_call(
        _fczero_streamed_kernel,
        out_shape=jax.ShapeDtypeStruct(h.shape, h.dtype),
        grid=(batch_tiles, deep),
        in_specs=[
            pl.BlockSpec((block_m, d), lambda i, l: (i, 0)),         # h (resident over layers)
            pl.BlockSpec((1, d, d), lambda i, l: (l, 0, 0)),         # streamed per-layer weight
            pl.BlockSpec((deep, 1, d), lambda i, l: (0, 0, 0)),      # resident biases
            pl.BlockSpec(memory_space=pltpu.MemorySpace.SMEM),       # alphas
        ],
        out_specs=pl.BlockSpec((block_m, d), lambda i, l: (i, 0)),
        scratch_shapes=[pltpu.VMEM((block_m, d), jnp.float32)],
        cost_estimate=cost,
        compiler_params=pltpu.CompilerParams(
            dimension_semantics=("parallel", "arbitrary"),
            vmem_limit_bytes=_vmem_limit(vmem_need, vmem_cap)),
    )(h, weights, b3, alphas)


def fczero_reference(h, weights, biases, alphas):
    """Pure-JAX reference mirroring the kernel's precision (bf16 matmul, f32 acc)."""
    h = h.astype(jnp.float32)
    for i in range(weights.shape[0]):
        z = jnp.dot(h.astype(weights.dtype), weights[i],
                    preferred_element_type=jnp.float32)
        z = z + biases[i].astype(jnp.float32)
        h = h + alphas[i] * jnp.maximum(z, 0.0)
    return h


if __name__ == "__main__":
    batch, dim, deep = 16, 128, 3

    key = jax.random.PRNGKey(0)
    kw, kb, kh = jax.random.split(key, 3)

    # torch.nn.Linear-style init, stored pre-transposed as (deep, in, out).
    bound = 1.0 / jnp.sqrt(jnp.float32(dim))
    weights_f32 = jax.random.uniform(kw, (deep, dim, dim), jnp.float32, -bound, bound)
    weights = weights_f32.astype(jnp.bfloat16)     # HBM storage dtype
    biases = jax.random.uniform(kb, (deep, dim), jnp.float32, -bound, bound)
    h = jax.random.normal(kh, (batch, dim), jnp.float32)

    alphas_zero = jnp.zeros((deep,), jnp.float32)  # module init -> identity (Id spec)
    alphas_nz = 0.1 * jnp.arange(1, deep + 1, dtype=jnp.float32)

    ref_nz = fczero_reference(h, weights, biases, alphas_nz)

    # 1) Faithful module init (alphas = 0): forward must be the identity (Id spec).
    out_id = jax.block_until_ready(fczero_forward(h, weights, biases, alphas_zero))
    assert jnp.allclose(out_id, h, atol=1e-6), "Id semantics: zero-alpha ReZero must return x"

    # 2) Fused matmul/ReLU path with nonzero alphas (weight-resident fast path).
    out_nz = jax.block_until_ready(fczero_forward(h, weights, biases, alphas_nz))
    assert jnp.allclose(out_nz, ref_nz, atol=1e-3, rtol=1e-3), "mismatch (resident path)"

    # 3) Streamed-weights path (what runs at large deep*D*D) on the same data.
    out_nz_s = jax.block_until_ready(
        fczero_forward(h, weights, biases, alphas_nz, weight_resident=False))
    assert jnp.allclose(out_nz_s, ref_nz, atol=1e-3, rtol=1e-3), "mismatch (streamed path)"

    print("KERNEL_OK")
</pallas_src>

<mosaic_0001>
module attributes {stable_mosaic.version = 11 : i64} {
  func.func @_fczero_resident_kernel(%arg0: i32, %arg1: memref<16x128xf32, #tpu.memory_space<vmem>>, %arg2: memref<3x128x128xbf16, #tpu.memory_space<vmem>>, %arg3: memref<3x1x128xf32, #tpu.memory_space<vmem>>, %arg4: memref<3xf32, #tpu.memory_space<smem>>, %arg5: memref<16x128xf32, #tpu.memory_space<vmem>>) attributes {dimension_semantics = [#tpu.dimension_semantics<parallel>], iteration_bounds = array<i64: 1>, scalar_prefetch = 0 : i64, scratch_operands = 0 : i64, tpu.core_type = #tpu.core_type<tc>, window_params = [{transform_indices = @transform_0, window_bounds = array<i64: 16, 128>}, {pipeline_mode = #tpu.pipeline_mode<synchronous>, transform_indices = @transform_1, window_bounds = array<i64: 3, 128, 128>}, {pipeline_mode = #tpu.pipeline_mode<synchronous>, transform_indices = @transform_2, window_bounds = array<i64: 3, 1, 128>}, {transform_indices = @transform_3, window_bounds = array<i64: 3>}, {transform_indices = @transform_4, window_bounds = array<i64: 16, 128>}]} {
    %c0 = arith.constant 0 : index
    %c0_0 = arith.constant 0 : index
    %0 = vector.load %arg1[%c0, %c0_0] : memref<16x128xf32, #tpu.memory_space<vmem>>, vector<16x128xf32>
    %c0_i32 = arith.constant 0 : i32
    %1 = arith.truncf %0 : vector<16x128xf32> to vector<16x128xbf16>
    %2 = arith.index_cast %c0_i32 : i32 to index
    %c0_1 = arith.constant 0 : index
    %c0_2 = arith.constant 0 : index
    %3 = vector.load %arg2[%2, %c0_1, %c0_2] : memref<3x128x128xbf16, #tpu.memory_space<vmem>>, vector<1x128x128xbf16>
    %4 = vector.shape_cast %3 : vector<1x128x128xbf16> to vector<128x128xbf16>
    %cst = arith.constant dense<0.000000e+00> : vector<16x128xf32>
    %5 = tpu.matmul %1, %4, %cst {dimension_numbers = #tpu.dot_dimension_numbers<[1], [0], [0], [1], [0, 0, 1, 1], [], []>} : vector<16x128xbf16>, vector<128x128xbf16>, vector<16x128xf32> -> vector<16x128xf32>
    %6 = arith.index_cast %c0_i32 : i32 to index
    %c0_3 = arith.constant 0 : index
    %c0_4 = arith.constant 0 : index
    %7 = vector.load %arg3[%6, %c0_3, %c0_4] : memref<3x1x128xf32, #tpu.memory_space<vmem>>, vector<1x1x128xf32>
    %8 = vector.shape_cast %7 : vector<1x1x128xf32> to vector<1x128xf32>
    %9 = vector.broadcast %8 : vector<1x128xf32> to vector<16x128xf32>
    %10 = arith.addf %5, %9 : vector<16x128xf32>
    %11 = arith.index_cast %c0_i32 : i32 to index
    %12 = memref.load %arg4[%11] : memref<3xf32, #tpu.memory_space<smem>>
    %cst_5 = arith.constant 0.000000e+00 : f32
    %13 = vector.broadcast %cst_5 : f32 to vector<16x128xf32>
    %14 = arith.maximumf %10, %13 : vector<16x128xf32>
    %15 = vector.broadcast %12 : f32 to vector<16x128xf32>
    %16 = arith.mulf %15, %14 : vector<16x128xf32>
    %17 = arith.addf %0, %16 : vector<16x128xf32>
    %c1_i32 = arith.constant 1 : i32
    %18 = arith.truncf %17 : vector<16x128xf32> to vector<16x128xbf16>
    %19 = arith.index_cast %c1_i32 : i32 to index
    %c0_6 = arith.constant 0 : index
    %c0_7 = arith.constant 0 : index
    %20 = vector.load %arg2[%19, %c0_6, %c0_7] : memref<3x128x128xbf16, #tpu.memory_space<vmem>>, vector<1x128x128xbf16>
    %21 = vector.shape_cast %20 : vector<1x128x128xbf16> to vector<128x128xbf16>
    %cst_8 = arith.constant dense<0.000000e+00> : vector<16x128xf32>
    %22 = tpu.matmul %18, %21, %cst_8 {dimension_numbers = #tpu.dot_dimension_numbers<[1], [0], [0], [1], [0, 0, 1, 1], [], []>} : vector<16x128xbf16>, vector<128x128xbf16>, vector<16x128xf32> -> vector<16x128xf32>
    %23 = arith.index_cast %c1_i32 : i32 to index
    %c0_9 = arith.constant 0 : index
    %c0_10 = arith.constant 0 : index
    %24 = vector.load %arg3[%23, %c0_9, %c0_10] : memref<3x1x128xf32, #tpu.memory_space<vmem>>, vector<1x1x128xf32>
    %25 = vector.shape_cast %24 : vector<1x1x128xf32> to vector<1x128xf32>
    %26 = vector.broadcast %25 : vector<1x128xf32> to vector<16x128xf32>
    %27 = arith.addf %22, %26 : vector<16x128xf32>
    %28 = arith.index_cast %c1_i32 : i32 to index
    %29 = memref.load %arg4[%28] : memref<3xf32, #tpu.memory_space<smem>>
    %cst_11 = arith.constant 0.000000e+00 : f32
    %30 = vector.broadcast %cst_11 : f32 to vector<16x128xf32>
    %31 = arith.maximumf %27, %30 : vector<16x128xf32>
    %32 = vector.broadcast %29 : f32 to vector<16x128xf32>
    %33 = arith.mulf %32, %31 : vector<16x128xf32>
    %34 = arith.addf %17, %33 : vector<16x128xf32>
    %c2_i32 = arith.constant 2 : i32
    %35 = arith.truncf %34 : vector<16x128xf32> to vector<16x128xbf16>
    %36 = arith.index_cast %c2_i32 : i32 to index
    %c0_12 = arith.constant 0 : index
    %c0_13 = arith.constant 0 : index
    %37 = vector.load %arg2[%36, %c0_12, %c0_13] : memref<3x128x128xbf16, #tpu.memory_space<vmem>>, vector<1x128x128xbf16>
    %38 = vector.shape_cast %37 : vector<1x128x128xbf16> to vector<128x128xbf16>
    %cst_14 = arith.constant dense<0.000000e+00> : vector<16x128xf32>
    %39 = tpu.matmul %35, %38, %cst_14 {dimension_numbers = #tpu.dot_dimension_numbers<[1], [0], [0], [1], [0, 0, 1, 1], [], []>} : vector<16x128xbf16>, vector<128x128xbf16>, vector<16x128xf32> -> vector<16x128xf32>
    %40 = arith.index_cast %c2_i32 : i32 to index
    %c0_15 = arith.constant 0 : index
    %c0_16 = arith.constant 0 : index
    %41 = vector.load %arg3[%40, %c0_15, %c0_16] : memref<3x1x128xf32, #tpu.memory_space<vmem>>, vector<1x1x128xf32>
    %42 = vector.shape_cast %41 : vector<1x1x128xf32> to vector<1x128xf32>
    %43 = vector.broadcast %42 : vector<1x128xf32> to vector<16x128xf32>
    %44 = arith.addf %39, %43 : vector<16x128xf32>
    %45 = arith.index_cast %c2_i32 : i32 to index
    %46 = memref.load %arg4[%45] : memref<3xf32, #tpu.memory_space<smem>>
    %cst_17 = arith.constant 0.000000e+00 : f32
    %47 = vector.broadcast %cst_17 : f32 to vector<16x128xf32>
    %48 = arith.maximumf %44, %47 : vector<16x128xf32>
    %49 = vector.broadcast %46 : f32 to vector<16x128xf32>
    %50 = arith.mulf %49, %48 : vector<16x128xf32>
    %51 = arith.addf %34, %50 : vector<16x128xf32>
    %c3_i32 = arith.constant 3 : i32
    %c0_18 = arith.constant 0 : index
    %c0_19 = arith.constant 0 : index
    %52 = vector.load %arg5[%c0_18, %c0_19] : memref<16x128xf32, #tpu.memory_space<vmem>>, vector<16x128xf32>
    tpu.vector_store %arg5[%c0_18, %c0_19], %51 {strides = array<i32>} : memref<16x128xf32, #tpu.memory_space<vmem>>, vector<16x128xf32>,
    return
  }
  func.func @transform_0(%arg0: i32) -> (i32, i32) {
    %c0_i32 = arith.constant 0 : i32
    %c0_i32_0 = arith.constant 0 : i32
    return %arg0, %c0_i32 : i32, i32
  }
  func.func @transform_1(%arg0: i32) -> (i32, i32, i32) {
    %c0_i32 = arith.constant 0 : i32
    %c0_i32_0 = arith.constant 0 : i32
    %c0_i32_1 = arith.constant 0 : i32
    %c0_i32_2 = arith.constant 0 : i32
    return %c0_i32, %c0_i32_0, %c0_i32_1 : i32, i32, i32
  }
  func.func @transform_2(%arg0: i32) -> (i32, i32, i32) {
    %c0_i32 = arith.constant 0 : i32
    %c0_i32_0 = arith.constant 0 : i32
    %c0_i32_1 = arith.constant 0 : i32
    %c0_i32_2 = arith.constant 0 : i32
    return %c0_i32, %c0_i32_0, %c0_i32_1 : i32, i32, i32
  }
  func.func @transform_3(%arg0: i32) -> i32 {
    %c0_i32 = arith.constant 0 : i32
    %c0_i32_0 = arith.constant 0 : i32
    return %c0_i32 : i32
  }
  func.func @transform_4(%arg0: i32) -> (i32, i32) {
    %c0_i32 = arith.constant 0 : i32
    %c0_i32_0 = arith.constant 0 : i32
    return %arg0, %c0_i32 : i32, i32
  }
}

</mosaic_0001>

<llo_original>
// kernel: tpu_custom_call.1
$region0: #{tpu_custom_call.1}
  #allocation0 [shape = 'u32[]', space=smem, size = 0x4, offset = 0x4, fixed_abs, tag = 'smem constant byte address 0x4 - core index']
  #allocation1 [shape = 'u32[144,128]{1,0:T(1,128)}', space=vmem, size = 0x12000, scoped, tag = 'internal scratch']
  %s0 = inlined_call_operand.hbm [shape: f32[16,128], index: 0, kind: input, shape index: {}]
  %s1 = inlined_call_operand.hbm [shape: bf16[3,128,128], index: 1, kind: input, shape index: {}]
  %s2 = inlined_call_operand.vmem [shape: f32[3,1,128], index: 2, kind: input, shape index: {}]
  %s3 = inlined_call_operand.vmem [shape: f32[3], index: 3, kind: input, shape index: {}]
  %s4 = inlined_call_operand.hbm [shape: f32[16,128], index: 4, kind: output, shape index: {}]
  %s5 = sld [smem:[#allocation0]]
  $region38: #{tpu_custom_call.1} parent=0
    _
  %s7 = ssub.s32 1, %s5
  %s8 = scalar_select 0, %s7, %s5
  $region1: #{tpu_custom_call.1} parent=0
    #allocation2 [shape = 'u8[8192]{0}', space=vmem, size = 0x2000, scoped, tag = 'input window, operand 0, single buffered']
    #allocation3 [shape = 's32[1]{0}', space=sflag, size = 0x4, scoped, tag = 'scoped memory for tpu_custom_call.1']
    #allocation4 [shape = 's32[1]{0}', space=sflag, size = 0x4, scoped, tag = 'scoped memory for tpu_custom_call.1']
    #allocation5 [shape = 's32[1]{0}', space=sflag, size = 0x4, scoped, tag = 'scoped memory for tpu_custom_call.1']
    #allocation6 [shape = 'u8[98304]{0}', space=vmem, size = 0x18000, scoped, tag = 'input window, operand 1, single buffered']
    #allocation7 [shape = 's32[1]{0}', space=sflag, size = 0x4, scoped, tag = 'scoped memory for tpu_custom_call.1']
    #allocation8 [shape = 'u8[512]{0}', space=smem, size = 0x200, scoped, tag = 'input window, operand 3, single buffered']
    #allocation9 [shape = 'u8[8192]{0}', space=vmem, size = 0x2000, scoped, tag = 'output window, operand 0, single buffered']
    %9 = vsyncpa [#allocation3], 0
    %10 = vsyncpa [#allocation7], 0
    %11 = vsyncpa [#allocation5], 0
    %12 = vsyncpa [#allocation4], 0
    // Predicated region
    $region2: #{tpu_custom_call.1} parent=1 // pred_check
      _
    $region3: #{tpu_custom_call.1} parent=1 // pred_check_branch
      %14 = sbr.rel (0) target = $region5
    $region4: #{tpu_custom_call.1} parent=1 // pred_region
      %s16 = ssub.s32 256, 256
      %17 = vsyncadd [#allocation3], %s16
      %s18 = sshll.u32 [#allocation2], 4
      %s19 = int_to_ptr.vmem [resolvable:$true] %s18
      %24 = dma.hbm_to_vmem [thread:$0]  %s0, 256, %s19, [#allocation3], 128, 128, 8
    $region5: #{tpu_custom_call.1} parent=1 // pred_fallthru
      _
    // Predicated region
    $region6: #{tpu_custom_call.1} parent=1 // pred_check
      _
    $region7: #{tpu_custom_call.1} parent=1 // pred_check_branch
      %26 = sbr.rel (0) target = $region9
    $region8: #{tpu_custom_call.1} parent=1 // pred_region
      %s28 = ssub.s32 3072, 3072
      %29 = vsyncadd [#allocation7], %s28
      %s30 = sshll.u32 [#allocation6], 4
      %s31 = int_to_ptr.vmem [resolvable:$true] %s30
      %36 = dma.hbm_to_vmem [thread:$0]  %s1, 3072, %s31, [#allocation7], 64, 64, 4
    $region9: #{tpu_custom_call.1} parent=1 // pred_fallthru
      _
    // Predicated region
    $region10: #{tpu_custom_call.1} parent=1 // pred_check
      _
    $region11: #{tpu_custom_call.1} parent=1 // pred_check_branch
      %38 = sbr.rel (0) target = $region13
    $region12: #{tpu_custom_call.1} parent=1 // pred_region
      _
    $region13: #{tpu_custom_call.1} parent=1 // pred_fallthru
      _
    // Predicated region
    $region14: #{tpu_custom_call.1} parent=1 // pred_check
      _
    $region15: #{tpu_custom_call.1} parent=1 // pred_check_branch
      %40 = sbr.rel (0) target = $region17
    $region16: #{tpu_custom_call.1} parent=1 // pred_region
      %s42 = ssub.s32 16, 16
      %43 = vsyncadd [#allocation5], %s42
      %s45 = sshll.u32 %s3, 4
      %s46 = int_to_ptr.vmem [resolvable:$true] %s45
      %48 = dma.vmem_to_smem %s46, 16, [#allocation8], [#allocation5]
    $region17: #{tpu_custom_call.1} parent=1 // pred_fallthru
      _
    // Predicated region
    $region18: #{tpu_custom_call.1} parent=1 // pred_check
      _
    $region19: #{tpu_custom_call.1} parent=1 // pred_check_branch
      %50 = sbr.rel (0) target = $region21
    $region20: #{tpu_custom_call.1} parent=1 // pred_region
      %51 = dma.done [#allocation3], 256
    $region21: #{tpu_custom_call.1} parent=1 // pred_fallthru
      _
    // Predicated region
    $region22: #{tpu_custom_call.1} parent=1 // pred_check
      _
    $region23: #{tpu_custom_call.1} parent=1 // pred_check_branch
      %53 = sbr.rel (0) target = $region25
    $region24: #{tpu_custom_call.1} parent=1 // pred_region
      %54 = dma.done [#allocation7], 3072
    $region25: #{tpu_custom_call.1} parent=1 // pred_fallthru
      _
    // Predicated region
    $region26: #{tpu_custom_call.1} parent=1 // pred_check
      _
    $region27: #{tpu_custom_call.1} parent=1 // pred_check_branch
      %56 = sbr.rel (0) target = $region29
    $region28: #{tpu_custom_call.1} parent=1 // pred_region
      %57 = dma.done [#allocation5], 16
    $region29: #{tpu_custom_call.1} parent=1 // pred_fallthru
      _
    %58 = sfence
    %v60 = vld [vmem:[#allocation2] sm:$0xff]
    %v61 = vld [vmem:[#allocation2 + $0x8] sm:$0xff]
    %v62 = vpack.c.bf16 %v61, %v60
    %v63 = vld [vmem:[#allocation6] sm:$0xf]
    %v64 = vld [vmem:[#allocation6 + $0x4] sm:$0xf]
    %v65 = vld [vmem:[#allocation6 + $0x8] sm:$0xf]
    %v66 = vld [vmem:[#allocation6 + $0xc] sm:$0xf]
    %v67 = vld [vmem:[#allocation6 + $0x10] sm:$0xf]
    %v68 = vld [vmem:[#allocation6 + $0x14] sm:$0xf]
    %v69 = vld [vmem:[#allocation6 + $0x18] sm:$0xf]
    %v70 = vld [vmem:[#allocation6 + $0x1c] sm:$0xf]
    %v71 = vld [vmem:[#allocation6 + $0x20] sm:$0xf]
    %v72 = vld [vmem:[#allocation6 + $0x24] sm:$0xf]
    %v73 = vld [vmem:[#allocation6 + $0x28] sm:$0xf]
    %v74 = vld [vmem:[#allocation6 + $0x2c] sm:$0xf]
    %v75 = vld [vmem:[#allocation6 + $0x30] sm:$0xf]
    %v76 = vld [vmem:[#allocation6 + $0x34] sm:$0xf]
    %v77 = vld [vmem:[#allocation6 + $0x38] sm:$0xf]
    %v78 = vld [vmem:[#allocation6 + $0x3c] sm:$0xf]
    %v79 = vld [vmem:[%s2] sm:$0x1]
    %v81 = vlaneseq
    %v82 = vshrl.u32 %v81, 7
    %v83 = vsub.s32 0, %v82
    %v84 = vrot.slane %v79, %v83
    %v102 = vunpack.c.l.b16 %v63
    %v103 = vunpack.c.l.b16 %v64
    %v104 = vunpack.c.l.b16 %v65
    %v105 = vunpack.c.l.b16 %v66
    %v106 = vunpack.c.l.b16 %v67
    %v107 = vunpack.c.l.b16 %v68
    %v108 = vunpack.c.l.b16 %v69
    %v109 = vunpack.c.l.b16 %v70
    %v110 = vunpack.c.l.b16 %v71
    %v111 = vunpack.c.l.b16 %v72
    %v112 = vunpack.c.l.b16 %v73
    %v113 = vunpack.c.l.b16 %v74
    %v114 = vunpack.c.l.b16 %v75
    %v115 = vunpack.c.l.b16 %v76
    %v116 = vunpack.c.l.b16 %v77
    %v117 = vunpack.c.l.b16 %v78
    %v118 = vpack.c.b16 %v103, %v102
    %v119 = vpack.c.b16 %v105, %v104
    %v120 = vpack.c.b16 %v107, %v106
    %v121 = vpack.c.b16 %v109, %v108
    %v122 = vpack.c.b16 %v111, %v110
    %v123 = vpack.c.b16 %v113, %v112
    %v124 = vpack.c.b16 %v115, %v114
    %v125 = vpack.c.b16 %v117, %v116
    %134 = vmatprep.subr.bf16.mxu0 0
    %135 = vmatpush1.bf16.msra.mxu0 %v118
    %136 = vmatprep.subr.bf16.mxu0 0
    %137 = vmatpush1.bf16.msra.mxu0 %v119
    %138 = vmatprep.subr.bf16.mxu0 0
    %139 = vmatpush1.bf16.msra.mxu0 %v120
    %140 = vmatprep.subr.bf16.mxu0 0
    %141 = vmatpush1.bf16.msra.mxu0 %v121
    %142 = vmatprep.subr.bf16.mxu0 0
    %143 = vmatpush1.bf16.msra.mxu0 %v122
    %144 = vmatprep.subr.bf16.mxu0 0
    %145 = vmatpush1.bf16.msra.mxu0 %v123
    %146 = vmatprep.subr.bf16.mxu0 0
    %147 = vmatpush1.bf16.msra.mxu0 %v124
    %148 = vmatprep.subr.bf16.mxu0 0
    %149 = vmatpush1.bf16.msra.mxu0 %v125
    %150 = vmatprep.subr.bf16.mxu0 0
    %151 = vmatpush1.bf16.msra.mxu0 0
    %152 = vmatprep.subr.bf16.mxu0 0
    %153 = vmatpush1.bf16.msra.mxu0 0
    %154 = vmatprep.subr.bf16.mxu0 0
    %155 = vmatpush1.bf16.msra.mxu0 0
    %156 = vmatprep.subr.bf16.mxu0 0
    %157 = vmatpush1.bf16.msra.mxu0 0
    %158 = vmatprep.subr.bf16.mxu0 0
    %159 = vmatpush1.bf16.msra.mxu0 0
    %160 = vmatprep.subr.bf16.mxu0 0
    %161 = vmatpush1.bf16.msra.mxu0 0
    %162 = vmatprep.subr.bf16.mxu0 0
    %163 = vmatpush1.bf16.msra.mxu0 0
    %164 = vmatprep.subr.bf16.mxu0 0
    %165 = vmatpush1.bf16.msra.mxu0 0
    %166 = vmatprep.mubr.bf16.mxu0 0
    %167 = vmatmul.mubr.bf16.gmra.mrb[0].mxu0 %v62
    %v168 = vpop.f32.mrb[0].mxu0
    %v169 = vadd.f32 %v84, %v168
    %v170 = vpop.f32.mrb[0].mxu0
    %v171 = vpop.f32.mrb[0].mxu0
    %v172 = vadd.f32 %v84, %v171
    %v173 = vpop.f32.mrb[0].mxu0
    %174 = vdwg.mxu0
    %s175 = sld [smem:[#allocation8]]
    %v176 = vmax.f32 %v169, 0.0
    %v177 = vmax.f32 %v172, 0.0
    %v178 = vstv %s175
    %v179 = vmul.f32 %v178, %v176
    %v180 = vmul.f32 %v178, %v177
    %v181 = vadd.f32 %v60, %v179
    %v182 = vadd.f32 %v61, %v180
    %v183 = vpack.c.bf16 %v182, %v181
    %s184 = scalar_lea.vmem [#allocation6], 64
    %v185 = vld [vmem:[%s184] sm:$0xf]
    %v186 = vld [vmem:[%s184 + $0x4] sm:$0xf]
    %v187 = vld [vmem:[%s184 + $0x8] sm:$0xf]
    %v188 = vld [vmem:[%s184 + $0xc] sm:$0xf]
    %v189 = vld [vmem:[%s184 + $0x10] sm:$0xf]
    %v190 = vld [vmem:[%s184 + $0x14] sm:$0xf]
    %v191 = vld [vmem:[%s184 + $0x18] sm:$0xf]
    %v192 = vld [vmem:[%s184 + $0x1c] sm:$0xf]
    %v193 = vld [vmem:[%s184 + $0x20] sm:$0xf]
    %v194 = vld [vmem:[%s184 + $0x24] sm:$0xf]
    %v195 = vld [vmem:[%s184 + $0x28] sm:$0xf]
    %v196 = vld [vmem:[%s184 + $0x2c] sm:$0xf]
    %v197 = vld [vmem:[%s184 + $0x30] sm:$0xf]
    %v198 = vld [vmem:[%s184 + $0x34] sm:$0xf]
    %v199 = vld [vmem:[%s184 + $0x38] sm:$0xf]
    %v200 = vld [vmem:[%s184 + $0x3c] sm:$0xf]
    %s201 = scalar_lea.vmem %s2, 1
    %v202 = vld [vmem:[%s201] sm:$0x1]
    %v204 = vlaneseq
    %v205 = vshrl.u32 %v204, 7
    %v206 = vsub.s32 0, %v205
    %v207 = vrot.slane %v202, %v206
    %v225 = vunpack.c.l.b16 %v185
    %v226 = vunpack.c.l.b16 %v186
    %v227 = vunpack.c.l.b16 %v187
    %v228 = vunpack.c.l.b16 %v188
    %v229 = vunpack.c.l.b16 %v189
    %v230 = vunpack.c.l.b16 %v190
    %v231 = vunpack.c.l.b16 %v191
    %v232 = vunpack.c.l.b16 %v192
    %v233 = vunpack.c.l.b16 %v193
    %v234 = vunpack.c.l.b16 %v194
    %v235 = vunpack.c.l.b16 %v195
    %v236 = vunpack.c.l.b16 %v196
    %v237 = vunpack.c.l.b16 %v197
    %v238 = vunpack.c.l.b16 %v198
    %v239 = vunpack.c.l.b16 %v199
    %v240 = vunpack.c.l.b16 %v200
    %v241 = vpack.c.b16 %v226, %v225
    %v242 = vpack.c.b16 %v228, %v227
    %v243 = vpack.c.b16 %v230, %v229
    %v244 = vpack.c.b16 %v232, %v231
    %v245 = vpack.c.b16 %v234, %v233
    %v246 = vpack.c.b16 %v236, %v235
    %v247 = vpack.c.b16 %v238, %v237
    %v248 = vpack.c.b16 %v240, %v239
    %257 = vmatprep.subr.bf16.mxu0 0
    %258 = vmatpush1.bf16.msra.mxu0 %v241
    %259 = vmatprep.subr.bf16.mxu0 0
    %260 = vmatpush1.bf16.msra.mxu0 %v242
    %261 = vmatprep.subr.bf16.mxu0 0
    %262 = vmatpush1.bf16.msra.mxu0 %v243
    %263 = vmatprep.subr.bf16.mxu0 0
    %264 = vmatpush1.bf16.msra.mxu0 %v244
    %265 = vmatprep.subr.bf16.mxu0 0
    %266 = vmatpush1.bf16.msra.mxu0 %v245
    %267 = vmatprep.subr.bf16.mxu0 0
    %268 = vmatpush1.bf16.msra.mxu0 %v246
    %269 = vmatprep.subr.bf16.mxu0 0
    %270 = vmatpush1.bf16.msra.mxu0 %v247
    %271 = vmatprep.subr.bf16.mxu0 0
    %272 = vmatpush1.bf16.msra.mxu0 %v248
    %273 = vmatprep.subr.bf16.mxu0 0
    %274 = vmatpush1.bf16.msra.mxu0 0
    %275 = vmatprep.subr.bf16.mxu0 0
    %276 = vmatpush1.bf16.msra.mxu0 0
    %277 = vmatprep.subr.bf16.mxu0 0
    %278 = vmatpush1.bf16.msra.mxu0 0
    %279 = vmatprep.subr.bf16.mxu0 0
    %280 = vmatpush1.bf16.msra.mxu0 0
    %281 = vmatprep.subr.bf16.mxu0 0
    %282 = vmatpush1.bf16.msra.mxu0 0
    %283 = vmatprep.subr.bf16.mxu0 0
    %284 = vmatpush1.bf16.msra.mxu0 0
    %285 = vmatprep.subr.bf16.mxu0 0
    %286 = vmatpush1.bf16.msra.mxu0 0
    %287 = vmatprep.subr.bf16.mxu0 0
    %288 = vmatpush1.bf16.msra.mxu0 0
    %289 = vmatprep.mubr.bf16.mxu0 0
    %290 = vmatmul.mubr.bf16.gmra.mrb[0].mxu0 %v183
    %v291 = vpop.f32.mrb[0].mxu0
    %v292 = vadd.f32 %v207, %v291
    %v293 = vpop.f32.mrb[0].mxu0
    %v294 = vpop.f32.mrb[0].mxu0
    %v295 = vadd.f32 %v207, %v294
    %v296 = vpop.f32.mrb[0].mxu0
    %297 = vdwg.mxu0
    %s298 = sld [smem:[#allocation8 + $0x1]]
    %v299 = vmax.f32 %v292, 0.0
    %v300 = vmax.f32 %v295, 0.0
    %v301 = vstv %s298
    %v302 = vmul.f32 %v301, %v299
    %v303 = vmul.f32 %v301, %v300
    %v304 = vadd.f32 %v181, %v302
    %v305 = vadd.f32 %v182, %v303
    %v306 = vpack.c.bf16 %v305, %v304
    %s307 = scalar_lea.vmem [#allocation6], 128
    %v308 = vld [vmem:[%s307] sm:$0xf]
    %v309 = vld [vmem:[%s307 + $0x4] sm:$0xf]
    %v310 = vld [vmem:[%s307 + $0x8] sm:$0xf]
    %v311 = vld [vmem:[%s307 + $0xc] sm:$0xf]
    %v312 = vld [vmem:[%s307 + $0x10] sm:$0xf]
    %v313 = vld [vmem:[%s307 + $0x14] sm:$0xf]
    %v314 = vld [vmem:[%s307 + $0x18] sm:$0xf]
    %v315 = vld [vmem:[%s307 + $0x1c] sm:$0xf]
    %v316 = vld [vmem:[%s307 + $0x20] sm:$0xf]
    %v317 = vld [vmem:[%s307 + $0x24] sm:$0xf]
    %v318 = vld [vmem:[%s307 + $0x28] sm:$0xf]
    %v319 = vld [vmem:[%s307 + $0x2c] sm:$0xf]
    %v320 = vld [vmem:[%s307 + $0x30] sm:$0xf]
    %v321 = vld [vmem:[%s307 + $0x34] sm:$0xf]
    %v322 = vld [vmem:[%s307 + $0x38] sm:$0xf]
    %v323 = vld [vmem:[%s307 + $0x3c] sm:$0xf]
    %s324 = scalar_lea.vmem %s2, 2
    %v325 = vld [vmem:[%s324] sm:$0x1]
    %v327 = vlaneseq
    %v328 = vshrl.u32 %v327, 7
    %v329 = vsub.s32 0, %v328
    %v330 = vrot.slane %v325, %v329
    %v348 = vunpack.c.l.b16 %v308
    %v349 = vunpack.c.l.b16 %v309
    %v350 = vunpack.c.l.b16 %v310
    %v351 = vunpack.c.l.b16 %v311
    %v352 = vunpack.c.l.b16 %v312
    %v353 = vunpack.c.l.b16 %v313
    %v354 = vunpack.c.l.b16 %v314
    %v355 = vunpack.c.l.b16 %v315
    %v356 = vunpack.c.l.b16 %v316
    %v357 = vunpack.c.l.b16 %v317
    %v358 = vunpack.c.l.b16 %v318
    %v359 = vunpack.c.l.b16 %v319
    %v360 = vunpack.c.l.b16 %v320
    %v361 = vunpack.c.l.b16 %v321
    %v362 = vunpack.c.l.b16 %v322
    %v363 = vunpack.c.l.b16 %v323
    %v364 = vpack.c.b16 %v349, %v348
    %v365 = vpack.c.b16 %v351, %v350
    %v366 = vpack.c.b16 %v353, %v352
    %v367 = vpack.c.b16 %v355, %v354
    %v368 = vpack.c.b16 %v357, %v356
    %v369 = vpack.c.b16 %v359, %v358
    %v370 = vpack.c.b16 %v361, %v360
    %v371 = vpack.c.b16 %v363, %v362
    %380 = vmatprep.subr.bf16.mxu0 0
    %381 = vmatpush1.bf16.msra.mxu0 %v364
    %382 = vmatprep.subr.bf16.mxu0 0
    %383 = vmatpush1.bf16.msra.mxu0 %v365
    %384 = vmatprep.subr.bf16.mxu0 0
    %385 = vmatpush1.bf16.msra.mxu0 %v366
    %386 = vmatprep.subr.bf16.mxu0 0
    %387 = vmatpush1.bf16.msra.mxu0 %v367
    %388 = vmatprep.subr.bf16.mxu0 0
    %389 = vmatpush1.bf16.msra.mxu0 %v368
    %390 = vmatprep.subr.bf16.mxu0 0
    %391 = vmatpush1.bf16.msra.mxu0 %v369
    %392 = vmatprep.subr.bf16.mxu0 0
    %393 = vmatpush1.bf16.msra.mxu0 %v370
    %394 = vmatprep.subr.bf16.mxu0 0
    %395 = vmatpush1.bf16.msra.mxu0 %v371
    %396 = vmatprep.subr.bf16.mxu0 0
    %397 = vmatpush1.bf16.msra.mxu0 0
    %398 = vmatprep.subr.bf16.mxu0 0
    %399 = vmatpush1.bf16.msra.mxu0 0
    %400 = vmatprep.subr.bf16.mxu0 0
    %401 = vmatpush1.bf16.msra.mxu0 0
    %402 = vmatprep.subr.bf16.mxu0 0
    %403 = vmatpush1.bf16.msra.mxu0 0
    %404 = vmatprep.subr.bf16.mxu0 0
    %405 = vmatpush1.bf16.msra.mxu0 0
    %406 = vmatprep.subr.bf16.mxu0 0
    %407 = vmatpush1.bf16.msra.mxu0 0
    %408 = vmatprep.subr.bf16.mxu0 0
    %409 = vmatpush1.bf16.msra.mxu0 0
    %410 = vmatprep.subr.bf16.mxu0 0
    %411 = vmatpush1.bf16.msra.mxu0 0
    %412 = vmatprep.mubr.bf16.mxu0 0
    %413 = vmatmul.mubr.bf16.gmra.mrb[0].mxu0 %v306
    %v414 = vpop.f32.mrb[0].mxu0
    %v415 = vadd.f32 %v330, %v414
    %v416 = vpop.f32.mrb[0].mxu0
    %v417 = vpop.f32.mrb[0].mxu0
    %v418 = vadd.f32 %v330, %v417
    %v419 = vpop.f32.mrb[0].mxu0
    %420 = vdwg.mxu0
    %s421 = sld [smem:[#allocation8 + $0x2]]
    %v422 = vmax.f32 %v415, 0.0
    %v423 = vmax.f32 %v418, 0.0
    %v424 = vstv %s421
    %v425 = vmul.f32 %v424, %v422
    %v426 = vmul.f32 %v424, %v423
    %v427 = vadd.f32 %v304, %v425
    %v428 = vadd.f32 %v305, %v426
    %429 = vst [vmem:[#allocation9] sm:$0xff] %v427
    %430 = vst [vmem:[#allocation9 + $0x8] sm:$0xff] %v428
    // Predicated region
    $region30: #{tpu_custom_call.1} parent=1 // pred_check
      _
    $region31: #{tpu_custom_call.1} parent=1 // pred_check_branch
      %432 = sbr.rel (0) target = $region33
    $region32: #{tpu_custom_call.1} parent=1 // pred_region
      %s434 = ssub.s32 256, 256
      %435 = vsyncadd [#allocation4], %s434
      %s436 = sshll.u32 [#allocation9], 4
      %s437 = int_to_ptr.vmem [resolvable:$true] %s436
      %442 = dma.vmem_to_hbm [thread:$0]  %s437, 256, %s4, [#allocation4], 128, 128, 8
    $region33: #{tpu_custom_call.1} parent=1 // pred_fallthru
      _
    // Predicated region
    $region34: #{tpu_custom_call.1} parent=1 // pred_check
      _
    $region35: #{tpu_custom_call.1} parent=1 // pred_check_branch
      %444 = sbr.rel (0) target = $region37
    $region36: #{tpu_custom_call.1} parent=1 // pred_region
      %445 = dma.done [#allocation4], 256
    $region37: #{tpu_custom_call.1} parent=1 // pred_fallthru
      _
    %446 = vsyncpa [#allocation3], 1
    %447 = vsyncpa [#allocation7], 1
    %448 = vsyncpa [#allocation4], 1
    %449 = vsyncpa [#allocation5], 1

</llo_original>
